<compile_context>
chip_gen: v7x
topology: tpu7x:2x2x1
jax: 0.10.0
libtpu: 0.0.40
codegen_flags: <defaults>
</compile_context>

<pallas_src>
import functools
import math

import numpy as np

import jax
import jax.numpy as jnp
from jax.experimental import pallas as pl
from jax.experimental.pallas import tpu as pltpu


# --------------------- trace-time resampling coefficients -------------------


def _nearest_src(out_size, in_size):
    # PyTorch 'nearest': src = floor(dst * in / out), clamped.
    scale = in_size / out_size
    return [min(int(math.floor(d * scale)), in_size - 1) for d in range(out_size)]


def _linear_taps(out_size, in_size, align_corners):
    taps = []
    for d in range(out_size):
        if align_corners and out_size > 1:
            src = d * (in_size - 1) / (out_size - 1)
        else:
            src = (d + 0.5) * in_size / out_size - 0.5
        src = min(max(src, 0.0), float(in_size - 1))
        lo = int(math.floor(src))
        hi = min(lo + 1, in_size - 1)
        taps.append((lo, hi, float(src - lo)))
    return taps


def _h_taps(mode, out_size, in_size, align_corners):
    if mode == "nearest":
        return _nearest_src(out_size, in_size)
    return _linear_taps(out_size, in_size, align_corners)


def _w_matrix(mode, out_size, in_size, align_corners, dtype):
    """(W_in, W_out) resampling matrix used by the in-kernel MXU matmul."""
    m = np.zeros((in_size, out_size), dtype=np.float32)
    if mode == "nearest":
        for o, s in enumerate(_nearest_src(out_size, in_size)):
            m[s, o] = 1.0
    else:
        for o, (lo, hi, f) in enumerate(_linear_taps(out_size, in_size, align_corners)):
            m[lo, o] += 1.0 - f
            m[hi, o] += f
    return jnp.asarray(m, dtype=dtype)


# ------------------------------ Pallas kernel -------------------------------


def _make_resize_kernel(mode, h_taps, w_first):
    """Kernel over one (TNC, H_in, W_in) tile -> (TNC, H_out, W_out) tile."""
    h_out = len(h_taps)

    def h_resample(t):
        # t: (TNC, H_src, W); returns (TNC, H_out, W). Indices/fracs are
        # compile-time constants -> static sublane slices + VPU madds only.
        # TODO(synk): for very large H_out this unrolled loop should fall back
        # to a matmul formulation to bound code size.
        rows = []
        for tap in h_taps:
            if mode == "nearest":
                rows.append(t[:, tap:tap + 1, :])
            else:
                lo, hi, f = tap
                r = t[:, lo:lo + 1, :].astype(jnp.float32)
                if f != 0.0:
                    r = r * (1.0 - f) + t[:, hi:hi + 1, :].astype(jnp.float32) * f
                rows.append(r)
        if len(rows) == 1:
            return rows[0]
        return jnp.concatenate(rows, axis=1)

    def kernel(x_ref, ww_ref, o_ref):
        x = x_ref[...]                       # (TNC, H_in, W_in), native dtype
        tnc, h_in, w_in = x.shape
        if w_first:
            # W resize: one folded MXU matmul, M = TNC*H_in (native dtype in,
            # f32 accumulate), then the cheap H tap stage on the VPU.
            tmp = jnp.dot(x.reshape(tnc * h_in, w_in), ww_ref[...],
                          preferred_element_type=jnp.float32)
            tmp = tmp.reshape(tnc, h_in, tmp.shape[-1])
            out = h_resample(tmp)            # (TNC, H_out, W_out)
            o_ref[...] = out.astype(o_ref.dtype)
        else:
            # H resize first (cheaper when downsampling H), then folded matmul
            # with M = TNC*H_out.
            t = h_resample(x)                # (TNC, H_out, W_in)
            out = jnp.dot(t.reshape(tnc * h_out, w_in), ww_ref[...],
                          preferred_element_type=jnp.float32)
            o_ref[...] = out.reshape(tnc, h_out, out.shape[-1]).astype(o_ref.dtype)

    return kernel


# ------------------------- generation-aware tiling ---------------------------


def _device_vmem_params():
    """(block budget bytes, vmem_limit_bytes or None) per TPU generation."""
    try:
        kind = jax.devices()[0].device_kind.lower()
    except Exception:
        kind = ""
    if "lite" in kind or "v5e" in kind:
        # v5e / v6e "lite" parts: 128 MiB physical VMEM; raise the small
        # default scoped limit so roofline-sized tiles fit.
        return 12 << 20, 48 << 20
    if any(t in kind for t in ("v4", "v5", "v6")):
        return 24 << 20, 64 << 20
    # v7x (64 MiB physical) / unknown: stay inside the default scoped limit.
    return 12 << 20, None


def _pick_tnc(nc, h_in, w_in, h_mid, h_out, w_out, in_bytes, out_bytes, budget):
    pad8 = lambda v: -(-v // 8) * 8
    padl = lambda v: -(-v // 128) * 128
    # Double-buffered input/output blocks + f32 intermediates, padded to
    # the (8,128) VMEM tile.
    per_slice = (2 * pad8(h_in) * padl(w_in) * in_bytes
                 + 2 * pad8(h_out) * padl(w_out) * out_bytes
                 + 4 * pad8(h_mid) * padl(max(w_in, w_out))
                 + 4 * pad8(h_out) * padl(w_out))
    tnc = max(1, budget // per_slice)
    tnc = int(min(tnc, 1024, nc))
    if tnc >= 8:
        tnc -= tnc % 8
    return max(tnc, 1)


def _pallas_separable_resize(x_nc, ww, mode, h_taps, w_first, h_out, tnc,
                             vmem_limit):
    nc, h_in, w_in = x_nc.shape
    w_out = ww.shape[1]
    kernel = _make_resize_kernel(mode, h_taps, w_first)
    return pl.pallas_call(
        kernel,
        out_shape=jax.ShapeDtypeStruct((nc, h_out, w_out), x_nc.dtype),
        grid_spec=pltpu.PrefetchScalarGridSpec(
            num_scalar_prefetch=0,
            grid=(nc // tnc,),
            in_specs=[
                pl.BlockSpec((tnc, h_in, w_in), lambda i: (i, 0, 0)),
                # Constant-indexed weight block: stays resident across steps.
                pl.BlockSpec((w_in, w_out), lambda i: (0, 0)),
            ],
            out_specs=pl.BlockSpec((tnc, h_out, w_out), lambda i: (i, 0, 0)),
        ),
        compiler_params=pltpu.CompilerParams(
            dimension_semantics=("parallel",),
            vmem_limit_bytes=vmem_limit,
        ),
    )(x_nc, ww)


# -------------------------------- module API ---------------------------------


class DeephiInterpolate:
    """JAX/Pallas port of deephi_Interpolate (quantizer disabled -> identity
    pre/post processing, core op is F.interpolate)."""

    def __init__(self):
        # deephi quantization bookkeeping has no effect without a quantizer.
        self.valid_inputs = None
        self.valid_output = None
        self.params_name = None
        self.node = None
        self.quant_mode, self.quantizer = None, None

    def __call__(self, input, size=None, scale_factor=None, mode="nearest",
                 align_corners=None):
        if isinstance(size, list):
            size = tuple(size)
        if isinstance(scale_factor, list):
            scale_factor = tuple(scale_factor)
        return interpolate(input, size=size, scale_factor=scale_factor,
                           mode=mode, align_corners=align_corners)


@functools.partial(jax.jit,
                   static_argnames=("size", "scale_factor", "mode",
                                    "align_corners"))
def interpolate(x, size=None, scale_factor=None, mode="nearest",
                align_corners=None):
    """x: (N, C, H, W). Supports mode in {'nearest', 'bilinear'}."""
    if x.ndim != 4:
        # TODO(synk): 3-D / 5-D inputs (linear / trilinear) not implemented.
        raise NotImplementedError("only 4-D NCHW inputs are supported")
    n, c, h_in, w_in = x.shape

    if size is not None:
        if isinstance(size, int):
            h_out, w_out = size, size
        else:
            h_out, w_out = int(size[0]), int(size[1])
    elif scale_factor is not None:
        if isinstance(scale_factor, (tuple, list)):
            sh, sw = float(scale_factor[0]), float(scale_factor[1])
        else:
            sh = sw = float(scale_factor)
        # TODO(synk): PyTorch recompute_scale_factor corner cases for some
        # non-integer scales can differ by one output pixel.
        h_out, w_out = int(h_in * sh), int(w_in * sw)
    else:
        raise ValueError("either size or scale_factor must be given")

    if mode not in ("nearest", "bilinear"):
        # TODO(synk): 'bicubic' / 'trilinear' / 'area' modes not implemented.
        raise NotImplementedError(f"mode {mode!r} not supported")
    ac = bool(align_corners) if align_corners is not None else False

    # W resize weights (MXU matmul); bf16 weights when the input is bf16/f16
    # (one-hot 'nearest' weights stay exact; tiny bilinear precision loss).
    if x.dtype == jnp.bfloat16 or x.dtype == jnp.float16:
        w_dtype = x.dtype
    else:
        w_dtype = jnp.float32
    ww = _w_matrix(mode, w_out, w_in, ac, w_dtype)
    h_taps = tuple(_h_taps(mode, h_out, h_in, ac))

    # Stage order: put the cheaper H extent on the matmul's M dimension.
    w_first = h_in <= h_out

    nc = n * c
    in_bytes = x.dtype.itemsize
    budget, vmem_limit = _device_vmem_params()
    tnc = _pick_tnc(nc, h_in, w_in, h_in if w_first else h_out, h_out, w_out,
                    in_bytes, in_bytes, budget)

    x_nc = x.reshape(nc, h_in, w_in)
    pad = (-nc) % tnc
    if pad:
        x_nc = jnp.pad(x_nc, ((0, pad), (0, 0), (0, 0)))

    out_nc = _pallas_separable_resize(x_nc, ww, mode, h_taps, w_first,
                                      h_out, tnc, vmem_limit)
    if pad:
        out_nc = out_nc[:nc]
    return out_nc.reshape(n, c, h_out, w_out)


# ----------------------------- reference helpers -----------------------------


def _ref_linear_matrix(out_size, in_size, align_corners):
    dst = jnp.arange(out_size, dtype=jnp.float32)
    if align_corners and out_size > 1:
        src = dst * ((in_size - 1) / (out_size - 1))
    else:
        src = (dst + 0.5) * (in_size / out_size) - 0.5
    src = jnp.clip(src, 0.0, float(in_size - 1))
    lo = jnp.floor(src).astype(jnp.int32)
    hi = jnp.minimum(lo + 1, in_size - 1)
    frac = (src - lo.astype(jnp.float32))[:, None]
    return (jax.nn.one_hot(lo, in_size, dtype=jnp.float32) * (1.0 - frac)
            + jax.nn.one_hot(hi, in_size, dtype=jnp.float32) * frac)


# ------------------------------------ main -----------------------------------


if __name__ == "__main__":
    key = jax.random.PRNGKey(0)
    x = jax.random.normal(key, (2, 4, 16, 16), dtype=jnp.float32)

    mod = DeephiInterpolate()

    # nearest, scale_factor=2 (PyTorch default mode)
    y_near = jax.block_until_ready(mod(x, scale_factor=2.0, mode="nearest"))
    assert y_near.shape == (2, 4, 32, 32), y_near.shape
    h_idx = np.array(_nearest_src(32, 16))
    w_idx = np.array(_nearest_src(32, 16))
    ref_near = x[:, :, h_idx, :][:, :, :, w_idx]
    assert jnp.allclose(y_near, ref_near, atol=1e-5), "nearest mismatch"

    # nearest on a bf16 input (exercises the native-dtype MXU path)
    xb = x.astype(jnp.bfloat16)
    y_near_b = jax.block_until_ready(mod(xb, scale_factor=2.0, mode="nearest"))
    ref_near_b = xb[:, :, h_idx, :][:, :, :, w_idx]
    assert jnp.array_equal(y_near_b, ref_near_b), "bf16 nearest mismatch"

    # bilinear, explicit size, align_corners=False
    y_bil = jax.block_until_ready(mod(x, size=(24, 40), mode="bilinear",
                                      align_corners=False))
    assert y_bil.shape == (2, 4, 24, 40), y_bil.shape
    wh_ref = _ref_linear_matrix(24, 16, False)
    ww_ref = _ref_linear_matrix(40, 16, False)
    ref_bil = jnp.einsum("oh,nchw,pw->ncop", wh_ref, x, ww_ref)
    assert jnp.allclose(y_bil, ref_bil, atol=1e-4), "bilinear mismatch"

    # bilinear, align_corners=True
    y_ac = jax.block_until_ready(mod(x, size=(32, 32), mode="bilinear",
                                     align_corners=True))
    wh_ac = _ref_linear_matrix(32, 16, True)
    ww_ac = _ref_linear_matrix(32, 16, True)
    ref_ac = jnp.einsum("oh,nchw,pw->ncop", wh_ac, x, ww_ac)
    assert jnp.allclose(y_ac, ref_ac, atol=1e-4), "bilinear(ac) mismatch"

    print("KERNEL_OK")
</pallas_src>

<mosaic_0001>
module attributes {stable_mosaic.version = 11 : i64} {
  func.func @kernel(%arg0: i32, %arg1: memref<8x16x16xf32, #tpu.memory_space<vmem>>, %arg2: memref<16x32xf32, #tpu.memory_space<vmem>>, %arg3: memref<8x32x32xf32, #tpu.memory_space<vmem>>) attributes {dimension_semantics = [#tpu.dimension_semantics<parallel>], iteration_bounds = array<i64: 1>, scalar_prefetch = 0 : i64, scratch_operands = 0 : i64, tpu.core_type = #tpu.core_type<tc>, window_params = [{transform_indices = @transform_0, window_bounds = array<i64: 8, 16, 16>}, {pipeline_mode = #tpu.pipeline_mode<synchronous>, transform_indices = @transform_1, window_bounds = array<i64: 16, 32>}, {transform_indices = @transform_2, window_bounds = array<i64: 8, 32, 32>}]} {
    %c0 = arith.constant 0 : index
    %c0_0 = arith.constant 0 : index
    %c0_1 = arith.constant 0 : index
    %0 = vector.load %arg1[%c0, %c0_0, %c0_1] : memref<8x16x16xf32, #tpu.memory_space<vmem>>, vector<8x16x16xf32>
    %1 = vector.shape_cast %0 : vector<8x16x16xf32> to vector<128x16xf32>
    %c0_2 = arith.constant 0 : index
    %c0_3 = arith.constant 0 : index
    %2 = vector.load %arg2[%c0_2, %c0_3] : memref<16x32xf32, #tpu.memory_space<vmem>>, vector<16x32xf32>
    %cst = arith.constant dense<0.000000e+00> : vector<128x32xf32>
    %3 = tpu.matmul %1, %2, %cst {dimension_numbers = #tpu.dot_dimension_numbers<[1], [0], [0], [1], [0, 0, 1, 1], [], []>} : vector<128x16xf32>, vector<16x32xf32>, vector<128x32xf32> -> vector<128x32xf32>
    %4 = vector.shape_cast %3 : vector<128x32xf32> to vector<8x16x32xf32>
    %5 = vector.extract_strided_slice %4 {offsets = [0, 0, 0], sizes = [8, 1, 32], strides = [1, 1, 1]} : vector<8x16x32xf32> to vector<8x1x32xf32>
    %6 = vector.extract_strided_slice %4 {offsets = [0, 0, 0], sizes = [8, 1, 32], strides = [1, 1, 1]} : vector<8x16x32xf32> to vector<8x1x32xf32>
    %7 = vector.extract_strided_slice %4 {offsets = [0, 1, 0], sizes = [8, 1, 32], strides = [1, 1, 1]} : vector<8x16x32xf32> to vector<8x1x32xf32>
    %8 = vector.extract_strided_slice %4 {offsets = [0, 1, 0], sizes = [8, 1, 32], strides = [1, 1, 1]} : vector<8x16x32xf32> to vector<8x1x32xf32>
    %9 = vector.extract_strided_slice %4 {offsets = [0, 2, 0], sizes = [8, 1, 32], strides = [1, 1, 1]} : vector<8x16x32xf32> to vector<8x1x32xf32>
    %10 = vector.extract_strided_slice %4 {offsets = [0, 2, 0], sizes = [8, 1, 32], strides = [1, 1, 1]} : vector<8x16x32xf32> to vector<8x1x32xf32>
    %11 = vector.extract_strided_slice %4 {offsets = [0, 3, 0], sizes = [8, 1, 32], strides = [1, 1, 1]} : vector<8x16x32xf32> to vector<8x1x32xf32>
    %12 = vector.extract_strided_slice %4 {offsets = [0, 3, 0], sizes = [8, 1, 32], strides = [1, 1, 1]} : vector<8x16x32xf32> to vector<8x1x32xf32>
    %13 = vector.extract_strided_slice %4 {offsets = [0, 4, 0], sizes = [8, 1, 32], strides = [1, 1, 1]} : vector<8x16x32xf32> to vector<8x1x32xf32>
    %14 = vector.extract_strided_slice %4 {offsets = [0, 4, 0], sizes = [8, 1, 32], strides = [1, 1, 1]} : vector<8x16x32xf32> to vector<8x1x32xf32>
    %15 = vector.extract_strided_slice %4 {offsets = [0, 5, 0], sizes = [8, 1, 32], strides = [1, 1, 1]} : vector<8x16x32xf32> to vector<8x1x32xf32>
    %16 = vector.extract_strided_slice %4 {offsets = [0, 5, 0], sizes = [8, 1, 32], strides = [1, 1, 1]} : vector<8x16x32xf32> to vector<8x1x32xf32>
    %17 = vector.extract_strided_slice %4 {offsets = [0, 6, 0], sizes = [8, 1, 32], strides = [1, 1, 1]} : vector<8x16x32xf32> to vector<8x1x32xf32>
    %18 = vector.extract_strided_slice %4 {offsets = [0, 6, 0], sizes = [8, 1, 32], strides = [1, 1, 1]} : vector<8x16x32xf32> to vector<8x1x32xf32>
    %19 = vector.extract_strided_slice %4 {offsets = [0, 7, 0], sizes = [8, 1, 32], strides = [1, 1, 1]} : vector<8x16x32xf32> to vector<8x1x32xf32>
    %20 = vector.extract_strided_slice %4 {offsets = [0, 7, 0], sizes = [8, 1, 32], strides = [1, 1, 1]} : vector<8x16x32xf32> to vector<8x1x32xf32>
    %21 = vector.extract_strided_slice %4 {offsets = [0, 8, 0], sizes = [8, 1, 32], strides = [1, 1, 1]} : vector<8x16x32xf32> to vector<8x1x32xf32>
    %22 = vector.extract_strided_slice %4 {offsets = [0, 8, 0], sizes = [8, 1, 32], strides = [1, 1, 1]} : vector<8x16x32xf32> to vector<8x1x32xf32>
    %23 = vector.extract_strided_slice %4 {offsets = [0, 9, 0], sizes = [8, 1, 32], strides = [1, 1, 1]} : vector<8x16x32xf32> to vector<8x1x32xf32>
    %24 = vector.extract_strided_slice %4 {offsets = [0, 9, 0], sizes = [8, 1, 32], strides = [1, 1, 1]} : vector<8x16x32xf32> to vector<8x1x32xf32>
    %25 = vector.extract_strided_slice %4 {offsets = [0, 10, 0], sizes = [8, 1, 32], strides = [1, 1, 1]} : vector<8x16x32xf32> to vector<8x1x32xf32>
    %26 = vector.extract_strided_slice %4 {offsets = [0, 10, 0], sizes = [8, 1, 32], strides = [1, 1, 1]} : vector<8x16x32xf32> to vector<8x1x32xf32>
    %27 = vector.extract_strided_slice %4 {offsets = [0, 11, 0], sizes = [8, 1, 32], strides = [1, 1, 1]} : vector<8x16x32xf32> to vector<8x1x32xf32>
    %28 = vector.extract_strided_slice %4 {offsets = [0, 11, 0], sizes = [8, 1, 32], strides = [1, 1, 1]} : vector<8x16x32xf32> to vector<8x1x32xf32>
    %29 = vector.extract_strided_slice %4 {offsets = [0, 12, 0], sizes = [8, 1, 32], strides = [1, 1, 1]} : vector<8x16x32xf32> to vector<8x1x32xf32>
    %30 = vector.extract_strided_slice %4 {offsets = [0, 12, 0], sizes = [8, 1, 32], strides = [1, 1, 1]} : vector<8x16x32xf32> to vector<8x1x32xf32>
    %31 = vector.extract_strided_slice %4 {offsets = [0, 13, 0], sizes = [8, 1, 32], strides = [1, 1, 1]} : vector<8x16x32xf32> to vector<8x1x32xf32>
    %32 = vector.extract_strided_slice %4 {offsets = [0, 13, 0], sizes = [8, 1, 32], strides = [1, 1, 1]} : vector<8x16x32xf32> to vector<8x1x32xf32>
    %33 = vector.extract_strided_slice %4 {offsets = [0, 14, 0], sizes = [8, 1, 32], strides = [1, 1, 1]} : vector<8x16x32xf32> to vector<8x1x32xf32>
    %34 = vector.extract_strided_slice %4 {offsets = [0, 14, 0], sizes = [8, 1, 32], strides = [1, 1, 1]} : vector<8x16x32xf32> to vector<8x1x32xf32>
    %35 = vector.extract_strided_slice %4 {offsets = [0, 15, 0], sizes = [8, 1, 32], strides = [1, 1, 1]} : vector<8x16x32xf32> to vector<8x1x32xf32>
    %36 = vector.extract_strided_slice %4 {offsets = [0, 15, 0], sizes = [8, 1, 32], strides = [1, 1, 1]} : vector<8x16x32xf32> to vector<8x1x32xf32>
    %37 = tpu.concatenate %5, %6, %7, %8, %9, %10, %11, %12, %13, %14, %15, %16, %17, %18, %19, %20 in 1 : vector<8x1x32xf32>, vector<8x1x32xf32>, vector<8x1x32xf32>, vector<8x1x32xf32>, vector<8x1x32xf32>, vector<8x1x32xf32>, vector<8x1x32xf32>, vector<8x1x32xf32>, vector<8x1x32xf32>, vector<8x1x32xf32>, vector<8x1x32xf32>, vector<8x1x32xf32>, vector<8x1x32xf32>, vector<8x1x32xf32>, vector<8x1x32xf32>, vector<8x1x32xf32> -> vector<8x16x32xf32>
    %38 = tpu.concatenate %21, %22, %23, %24, %25, %26, %27, %28, %29, %30, %31, %32, %33, %34, %35, %36 in 1 : vector<8x1x32xf32>, vector<8x1x32xf32>, vector<8x1x32xf32>, vector<8x1x32xf32>, vector<8x1x32xf32>, vector<8x1x32xf32>, vector<8x1x32xf32>, vector<8x1x32xf32>, vector<8x1x32xf32>, vector<8x1x32xf32>, vector<8x1x32xf32>, vector<8x1x32xf32>, vector<8x1x32xf32>, vector<8x1x32xf32>, vector<8x1x32xf32>, vector<8x1x32xf32> -> vector<8x16x32xf32>
    %39 = tpu.concatenate %37, %38 in 1 : vector<8x16x32xf32>, vector<8x16x32xf32> -> vector<8x32x32xf32>
    %c0_4 = arith.constant 0 : index
    %c0_5 = arith.constant 0 : index
    %c0_6 = arith.constant 0 : index
    %40 = vector.load %arg3[%c0_4, %c0_5, %c0_6] : memref<8x32x32xf32, #tpu.memory_space<vmem>>, vector<8x32x32xf32>
    tpu.vector_store %arg3[%c0_4, %c0_5, %c0_6], %39 {strides = array<i32>} : memref<8x32x32xf32, #tpu.memory_space<vmem>>, vector<8x32x32xf32>,
    return
  }
  func.func @transform_0(%arg0: i32) -> (i32, i32, i32) {
    %c0_i32 = arith.constant 0 : i32
    %c0_i32_0 = arith.constant 0 : i32
    %c0_i32_1 = arith.constant 0 : i32
    return %arg0, %c0_i32, %c0_i32_0 : i32, i32, i32
  }
  func.func @transform_1(%arg0: i32) -> (i32, i32) {
    %c0_i32 = arith.constant 0 : i32
    %c0_i32_0 = arith.constant 0 : i32
    %c0_i32_1 = arith.constant 0 : i32
    return %c0_i32, %c0_i32_0 : i32, i32
  }
  func.func @transform_2(%arg0: i32) -> (i32, i32, i32) {
    %c0_i32 = arith.constant 0 : i32
    %c0_i32_0 = arith.constant 0 : i32
    %c0_i32_1 = arith.constant 0 : i32
    return %arg0, %c0_i32, %c0_i32_0 : i32, i32, i32
  }
}

</mosaic_0001>

<llo_original>
// kernel: interpolate.1
$region0: #{interpolate.1}
  #allocation0 [shape = 'u32[]', space=smem, size = 0x4, offset = 0x4, fixed_abs, tag = 'smem constant byte address 0x4 - core index']
  #allocation1 [shape = 'u32[144,128]{1,0:T(1,128)}', space=vmem, size = 0x12000, scoped, tag = 'internal scratch']
  %s0 = inlined_call_operand.hbm [shape: f32[8,16,16], index: 0, kind: input, shape index: {}]
  %s1 = inlined_call_operand.hbm [shape: f32[16,32], index: 1, kind: input, shape index: {}]
  %s2 = inlined_call_operand.hbm [shape: f32[8,32,32], index: 2, kind: output, shape index: {}]
  %s3 = sld [smem:[#allocation0]]
  $region26: #{interpolate.1} parent=0
    _
  %s5 = ssub.s32 1, %s3
  %s6 = scalar_select 0, %s5, %s3
  $region1: #{interpolate.1} parent=0
    #allocation2 [shape = 'u8[65536]{0}', space=vmem, size = 0x10000, scoped, tag = 'input window, operand 0, single buffered']
    #allocation3 [shape = 's32[1]{0}', space=sflag, size = 0x4, scoped, tag = 'scoped memory for interpolate.1']
    #allocation4 [shape = 's32[1]{0}', space=sflag, size = 0x4, scoped, tag = 'scoped memory for interpolate.1']
    #allocation5 [shape = 'u8[8192]{0}', space=vmem, size = 0x2000, scoped, tag = 'input window, operand 1, single buffered']
    #allocation6 [shape = 's32[1]{0}', space=sflag, size = 0x4, scoped, tag = 'scoped memory for interpolate.1']
    #allocation7 [shape = 'u8[131072]{0}', space=vmem, size = 0x20000, scoped, tag = 'output window, operand 0, single buffered']
    %7 = vsyncpa [#allocation3], 0
    %8 = vsyncpa [#allocation6], 0
    %9 = vsyncpa [#allocation4], 0
    // Predicated region
    $region2: #{interpolate.1} parent=1 // pred_check
      _
    $region3: #{interpolate.1} parent=1 // pred_check_branch
      %11 = sbr.rel (0) target = $region5
    $region4: #{interpolate.1} parent=1 // pred_region
      %s13 = ssub.s32 2048, 2048
      %14 = vsyncadd [#allocation3], %s13
      %s15 = sshll.u32 [#allocation2], 4
      %s16 = int_to_ptr.vmem [resolvable:$true] %s15
      %21 = dma.hbm_to_vmem [thread:$0]  %s0, 2048, %s16, [#allocation3], 128, 128, 8
    $region5: #{interpolate.1} parent=1 // pred_fallthru
      _
    // Predicated region
    $region6: #{interpolate.1} parent=1 // pred_check
      _
    $region7: #{interpolate.1} parent=1 // pred_check_branch
      %23 = sbr.rel (0) target = $region9
    $region8: #{interpolate.1} parent=1 // pred_region
      %s25 = ssub.s32 256, 256
      %26 = vsyncadd [#allocation6], %s25
      %s27 = sshll.u32 [#allocation5], 4
      %s28 = int_to_ptr.vmem [resolvable:$true] %s27
      %33 = dma.hbm_to_vmem [thread:$0]  %s1, 256, %s28, [#allocation6], 128, 128, 8
    $region9: #{interpolate.1} parent=1 // pred_fallthru
      _
    // Predicated region
    $region10: #{interpolate.1} parent=1 // pred_check
      _
    $region11: #{interpolate.1} parent=1 // pred_check_branch
      %35 = sbr.rel (0) target = $region13
    $region12: #{interpolate.1} parent=1 // pred_region
      %36 = dma.done [#allocation3], 2048
    $region13: #{interpolate.1} parent=1 // pred_fallthru
      _
    // Predicated region
    $region14: #{interpolate.1} parent=1 // pred_check
      _
    $region15: #{interpolate.1} parent=1 // pred_check_branch
      %38 = sbr.rel (0) target = $region17
    $region16: #{interpolate.1} parent=1 // pred_region
      %39 = dma.done [#allocation6], 256
    $region17: #{interpolate.1} parent=1 // pred_fallthru
      _
    %v40 = vld [vmem:[#allocation2] sm:$0xff]
    %v41 = vld [vmem:[#allocation2 + $0x8] sm:$0xff]
    %v42 = vld [vmem:[#allocation2 + $0x10] sm:$0xff]
    %v43 = vld [vmem:[#allocation2 + $0x18] sm:$0xff]
    %v44 = vld [vmem:[#allocation2 + $0x20] sm:$0xff]
    %v45 = vld [vmem:[#allocation2 + $0x28] sm:$0xff]
    %v46 = vld [vmem:[#allocation2 + $0x30] sm:$0xff]
    %v47 = vld [vmem:[#allocation2 + $0x38] sm:$0xff]
    %v48 = vld [vmem:[#allocation2 + $0x40] sm:$0xff]
    %v49 = vld [vmem:[#allocation2 + $0x48] sm:$0xff]
    %v50 = vld [vmem:[#allocation2 + $0x50] sm:$0xff]
    %v51 = vld [vmem:[#allocation2 + $0x58] sm:$0xff]
    %v52 = vld [vmem:[#allocation2 + $0x60] sm:$0xff]
    %v53 = vld [vmem:[#allocation2 + $0x68] sm:$0xff]
    %v54 = vld [vmem:[#allocation2 + $0x70] sm:$0xff]
    %v55 = vld [vmem:[#allocation2 + $0x78] sm:$0xff]
    %v56 = vld [vmem:[#allocation5] sm:$0xff]
    %v57 = vld [vmem:[#allocation5 + $0x8] sm:$0xff]
    %vm58 = vcmask 130048
    %v60 = vsel %vm58, %v40, 0
    %v63 = vsel %vm58, %v41, 0
    %v66 = vsel %vm58, %v42, 0
    %v69 = vsel %vm58, %v43, 0
    %v72 = vsel %vm58, %v44, 0
    %v75 = vsel %vm58, %v45, 0
    %v78 = vsel %vm58, %v46, 0
    %v81 = vsel %vm58, %v47, 0
    %v84 = vsel %vm58, %v48, 0
    %v87 = vsel %vm58, %v49, 0
    %v90 = vsel %vm58, %v50, 0
    %v93 = vsel %vm58, %v51, 0
    %v96 = vsel %vm58, %v52, 0
    %v99 = vsel %vm58, %v53, 0
    %v102 = vsel %vm58, %v54, 0
    %v105 = vsel %vm58, %v55, 0
    %107 = vmatprep.subr.mxu0 0.0
    %108 = vmatpush1.msra.mxu0 %v56
    %109 = vmatprep.subr.mxu0 0.0
    %110 = vmatpush1.msra.mxu0 %v57
    %111 = vmatprep.subr.mxu0 0.0
    %112 = vmatpush1.msra.mxu0 0.0
    %113 = vmatprep.subr.mxu0 0.0
    %114 = vmatpush1.msra.mxu0 0.0
    %115 = vmatprep.subr.mxu0 0.0
    %116 = vmatpush1.msra.mxu0 0.0
    %117 = vmatprep.subr.mxu0 0.0
    %118 = vmatpush1.msra.mxu0 0.0
    %119 = vmatprep.subr.mxu0 0.0
    %120 = vmatpush1.msra.mxu0 0.0
    %121 = vmatprep.subr.mxu0 0.0
    %122 = vmatpush1.msra.mxu0 0.0
    %123 = vmatprep.subr.mxu0 0.0
    %124 = vmatpush1.msra.mxu0 0.0
    %125 = vmatprep.subr.mxu0 0.0
    %126 = vmatpush1.msra.mxu0 0.0
    %127 = vmatprep.subr.mxu0 0.0
    %128 = vmatpush1.msra.mxu0 0.0
    %129 = vmatprep.subr.mxu0 0.0
    %130 = vmatpush1.msra.mxu0 0.0
    %131 = vmatprep.subr.mxu0 0.0
    %132 = vmatpush1.msra.mxu0 0.0
    %133 = vmatprep.subr.mxu0 0.0
    %134 = vmatpush1.msra.mxu0 0.0
    %135 = vmatprep.subr.mxu0 0.0
    %136 = vmatpush1.msra.mxu0 0.0
    %137 = vmatprep.subr.mxu0 0.0
    %138 = vmatpush1.msra.mxu0 0.0
    %139 = vmatprep.subr.mxu0 0.0
    %140 = vmatpush1.msra.mxu0 0.0
    %141 = vmatprep.subr.mxu0 0.0
    %142 = vmatpush1.msra.mxu0 0.0
    %143 = vmatprep.subr.mxu0 0.0
    %144 = vmatpush1.msra.mxu0 0.0
    %145 = vmatprep.subr.mxu0 0.0
    %146 = vmatpush1.msra.mxu0 0.0
    %147 = vmatprep.subr.mxu0 0.0
    %148 = vmatpush1.msra.mxu0 0.0
    %149 = vmatprep.subr.mxu0 0.0
    %150 = vmatpush1.msra.mxu0 0.0
    %151 = vmatprep.subr.mxu0 0.0
    %152 = vmatpush1.msra.mxu0 0.0
    %153 = vmatprep.subr.mxu0 0.0
    %154 = vmatpush1.msra.mxu0 0.0
    %155 = vmatprep.subr.mxu0 0.0
    %156 = vmatpush1.msra.mxu0 0.0
    %157 = vmatprep.subr.mxu0 0.0
    %158 = vmatpush1.msra.mxu0 0.0
    %159 = vmatprep.subr.mxu0 0.0
    %160 = vmatpush1.msra.mxu0 0.0
    %161 = vmatprep.subr.mxu0 0.0
    %162 = vmatpush1.msra.mxu0 0.0
    %163 = vmatprep.subr.mxu0 0.0
    %164 = vmatpush1.msra.mxu0 0.0
    %165 = vmatprep.subr.mxu0 0.0
    %166 = vmatpush1.msra.mxu0 0.0
    %167 = vmatprep.subr.mxu0 0.0
    %168 = vmatpush1.msra.mxu0 0.0
    %169 = vmatprep.subr.mxu0 0.0
    %170 = vmatpush1.msra.mxu0 0.0
    %171 = vmatprep.mubr.f32.mxu0 0.0
    %172 = vmatmul.mubr.f32.gmra.mrb[0].mxu0 %v60
    %v173 = vpop.f32.mrb[0].mxu0
    %v174 = vadd.f32 0.0, %v173
    %v175 = vpop.f32.mrb[0].mxu0
    %176 = vmatprep.mubr.f32.mxu0 0.0
    %177 = vmatmul.mubr.f32.gmra.mrb[0].mxu0 %v63
    %v178 = vpop.f32.mrb[0].mxu0
    %v179 = vadd.f32 0.0, %v178
    %v180 = vpop.f32.mrb[0].mxu0
    %181 = vmatprep.mubr.f32.mxu0 0.0
    %182 = vmatmul.mubr.f32.gmra.mrb[0].mxu0 %v66
    %v183 = vpop.f32.mrb[0].mxu0
    %v184 = vadd.f32 0.0, %v183
    %v185 = vpop.f32.mrb[0].mxu0
    %186 = vmatprep.mubr.f32.mxu0 0.0
    %187 = vmatmul.mubr.f32.gmra.mrb[0].mxu0 %v69
    %v188 = vpop.f32.mrb[0].mxu0
    %v189 = vadd.f32 0.0, %v188
    %v190 = vpop.f32.mrb[0].mxu0
    %191 = vmatprep.mubr.f32.mxu0 0.0
    %192 = vmatmul.mubr.f32.gmra.mrb[0].mxu0 %v72
    %v193 = vpop.f32.mrb[0].mxu0
    %v194 = vadd.f32 0.0, %v193
    %v195 = vpop.f32.mrb[0].mxu0
    %196 = vmatprep.mubr.f32.mxu0 0.0
    %197 = vmatmul.mubr.f32.gmra.mrb[0].mxu0 %v75
    %v198 = vpop.f32.mrb[0].mxu0
    %v199 = vadd.f32 0.0, %v198
    %v200 = vpop.f32.mrb[0].mxu0
    %201 = vmatprep.mubr.f32.mxu0 0.0
    %202 = vmatmul.mubr.f32.gmra.mrb[0].mxu0 %v78
    %v203 = vpop.f32.mrb[0].mxu0
    %v204 = vadd.f32 0.0, %v203
    %v205 = vpop.f32.mrb[0].mxu0
    %206 = vmatprep.mubr.f32.mxu0 0.0
    %207 = vmatmul.mubr.f32.gmra.mrb[0].mxu0 %v81
    %v208 = vpop.f32.mrb[0].mxu0
    %v209 = vadd.f32 0.0, %v208
    %v210 = vpop.f32.mrb[0].mxu0
    %211 = vmatprep.mubr.f32.mxu0 0.0
    %212 = vmatmul.mubr.f32.gmra.mrb[0].mxu0 %v84
    %v213 = vpop.f32.mrb[0].mxu0
    %v214 = vadd.f32 0.0, %v213
    %v215 = vpop.f32.mrb[0].mxu0
    %216 = vmatprep.mubr.f32.mxu0 0.0
    %217 = vmatmul.mubr.f32.gmra.mrb[0].mxu0 %v87
    %v218 = vpop.f32.mrb[0].mxu0
    %v219 = vadd.f32 0.0, %v218
    %v220 = vpop.f32.mrb[0].mxu0
    %221 = vmatprep.mubr.f32.mxu0 0.0
    %222 = vmatmul.mubr.f32.gmra.mrb[0].mxu0 %v90
    %v223 = vpop.f32.mrb[0].mxu0
    %v224 = vadd.f32 0.0, %v223
    %v225 = vpop.f32.mrb[0].mxu0
    %226 = vmatprep.mubr.f32.mxu0 0.0
    %227 = vmatmul.mubr.f32.gmra.mrb[0].mxu0 %v93
    %v228 = vpop.f32.mrb[0].mxu0
    %v229 = vadd.f32 0.0, %v228
    %v230 = vpop.f32.mrb[0].mxu0
    %231 = vmatprep.mubr.f32.mxu0 0.0
    %232 = vmatmul.mubr.f32.gmra.mrb[0].mxu0 %v96
    %v233 = vpop.f32.mrb[0].mxu0
    %v234 = vadd.f32 0.0, %v233
    %v235 = vpop.f32.mrb[0].mxu0
    %236 = vmatprep.mubr.f32.mxu0 0.0
    %237 = vmatmul.mubr.f32.gmra.mrb[0].mxu0 %v99
    %v238 = vpop.f32.mrb[0].mxu0
    %v239 = vadd.f32 0.0, %v238
    %v240 = vpop.f32.mrb[0].mxu0
    %241 = vmatprep.mubr.f32.mxu0 0.0
    %242 = vmatmul.mubr.f32.gmra.mrb[0].mxu0 %v102
    %v243 = vpop.f32.mrb[0].mxu0
    %v244 = vadd.f32 0.0, %v243
    %v245 = vpop.f32.mrb[0].mxu0
    %246 = vmatprep.mubr.f32.mxu0 0.0
    %247 = vmatmul.mubr.f32.gmra.mrb[0].mxu0 %v105
    %v248 = vpop.f32.mrb[0].mxu0
    %v249 = vadd.f32 0.0, %v248
    %v250 = vpop.f32.mrb[0].mxu0
    %251 = vdwg.mxu0
    %v260 = vrot.slane %v174, 7
    %v261 = vrot.slane %v184, 7
    %v262 = vrot.slane %v194, 7
    %v263 = vrot.slane %v204, 7
    %v264 = vrot.slane %v214, 7
    %v265 = vrot.slane %v224, 7
    %v266 = vrot.slane %v234, 7
    %v267 = vrot.slane %v244, 7
    %v276 = vrot.slane %v174, 6
    %v277 = vrot.slane %v184, 6
    %v278 = vrot.slane %v194, 6
    %v279 = vrot.slane %v204, 6
    %v280 = vrot.slane %v214, 6
    %v281 = vrot.slane %v224, 6
    %v282 = vrot.slane %v234, 6
    %v283 = vrot.slane %v244, 6
    %v292 = vrot.slane %v174, 5
    %v293 = vrot.slane %v184, 5
    %v294 = vrot.slane %v194, 5
    %v295 = vrot.slane %v204, 5
    %v296 = vrot.slane %v214, 5
    %v297 = vrot.slane %v224, 5
    %v298 = vrot.slane %v234, 5
    %v299 = vrot.slane %v244, 5
    %v308 = vrot.slane %v174, 4
    %v309 = vrot.slane %v184, 4
    %v310 = vrot.slane %v194, 4
    %v311 = vrot.slane %v204, 4
    %v312 = vrot.slane %v214, 4
    %v313 = vrot.slane %v224, 4
    %v314 = vrot.slane %v234, 4
    %v315 = vrot.slane %v244, 4
    %v324 = vrot.slane %v174, 3
    %v325 = vrot.slane %v184, 3
    %v326 = vrot.slane %v194, 3
    %v327 = vrot.slane %v204, 3
    %v328 = vrot.slane %v214, 3
    %v329 = vrot.slane %v224, 3
    %v330 = vrot.slane %v234, 3
    %v331 = vrot.slane %v244, 3
    %v340 = vrot.slane %v174, 2
    %v341 = vrot.slane %v184, 2
    %v342 = vrot.slane %v194, 2
    %v343 = vrot.slane %v204, 2
    %v344 = vrot.slane %v214, 2
    %v345 = vrot.slane %v224, 2
    %v346 = vrot.slane %v234, 2
    %v347 = vrot.slane %v244, 2
    %v356 = vrot.slane %v174, 1
    %v357 = vrot.slane %v184, 1
    %v358 = vrot.slane %v194, 1
    %v359 = vrot.slane %v204, 1
    %v360 = vrot.slane %v214, 1
    %v361 = vrot.slane %v224, 1
    %v362 = vrot.slane %v234, 1
    %v363 = vrot.slane %v244, 1
    %vm372 = vcmask 1040384
    %v373 = vsel %vm372, %v174, %v260
    %v374 = vsel %vm372, %v184, %v261
    %v375 = vsel %vm372, %v194, %v262
    %v376 = vsel %vm372, %v204, %v263
    %v377 = vsel %vm372, %v214, %v264
    %v378 = vsel %vm372, %v224, %v265
    %v379 = vsel %vm372, %v234, %v266
    %v380 = vsel %vm372, %v244, %v267
    %vm381 = vcmask 1041408
    %v382 = vsel %vm381, %v373, %v260
    %v383 = vsel %vm381, %v374, %v261
    %v384 = vsel %vm381, %v375, %v262
    %v385 = vsel %vm381, %v376, %v263
    %v386 = vsel %vm381, %v377, %v264
    %v387 = vsel %vm381, %v378, %v265
    %v388 = vsel %vm381, %v379, %v266
    %v389 = vsel %vm381, %v380, %v267
    %vm390 = vcmask 1042432
    %v391 = vsel %vm390, %v382, %v276
    %v392 = vsel %vm390, %v383, %v277
    %v393 = vsel %vm390, %v384, %v278
    %v394 = vsel %vm390, %v385, %v279
    %v395 = vsel %vm390, %v386, %v280
    %v396 = vsel %vm390, %v387, %v281
    %v397 = vsel %vm390, %v388, %v282
    %v398 = vsel %vm390, %v389, %v283
    %vm399 = vcmask 1043456
    %v400 = vsel %vm399, %v391, %v276
    %v401 = vsel %vm399, %v392, %v277
    %v402 = vsel %vm399, %v393, %v278
    %v403 = vsel %vm399, %v394, %v279
    %v404 = vsel %vm399, %v395, %v280
    %v405 = vsel %vm399, %v396, %v281
    %v406 = vsel %vm399, %v397, %v282
    %v407 = vsel %vm399, %v398, %v283
    %vm408 = vcmask 1044480
    %v409 = vsel %vm408, %v400, %v292
    %v410 = vsel %vm408, %v401, %v293
    %v411 = vsel %vm408, %v402, %v294
    %v412 = vsel %vm408, %v403, %v295
    %v413 = vsel %vm408, %v404, %v296
    %v414 = vsel %vm408, %v405, %v297
    %v415 = vsel %vm408, %v406, %v298
    %v416 = vsel %vm408, %v407, %v299
    %vm417 = vcmask 1045504
    %v418 = vsel %vm417, %v409, %v292
    %v419 = vsel %vm417, %v410, %v293
    %v420 = vsel %vm417, %v411, %v294
    %v421 = vsel %vm417, %v412, %v295
    %v422 = vsel %vm417, %v413, %v296
    %v423 = vsel %vm417, %v414, %v297
    %v424 = vsel %vm417, %v415, %v298
    %v425 = vsel %vm417, %v416, %v299
    %vm426 = vcmask 1046528
    %v427 = vsel %vm426, %v418, %v308
    %v428 = vsel %vm426, %v419, %v309
    %v429 = vsel %vm426, %v420, %v310
    %v430 = vsel %vm426, %v421, %v311
    %v431 = vsel %vm426, %v422, %v312
    %v432 = vsel %vm426, %v423, %v313
    %v433 = vsel %vm426, %v424, %v314
    %v434 = vsel %vm426, %v425, %v315
    %v435 = vsel %vm372, %v308, %v324
    %v436 = vsel %vm372, %v309, %v325
    %v437 = vsel %vm372, %v310, %v326
    %v438 = vsel %vm372, %v311, %v327
    %v439 = vsel %vm372, %v312, %v328
    %v440 = vsel %vm372, %v313, %v329
    %v441 = vsel %vm372, %v314, %v330
    %v442 = vsel %vm372, %v315, %v331
    %v443 = vsel %vm381, %v435, %v324
    %v444 = vsel %vm381, %v436, %v325
    %v445 = vsel %vm381, %v437, %v326
    %v446 = vsel %vm381, %v438, %v327
    %v447 = vsel %vm381, %v439, %v328
    %v448 = vsel %vm381, %v440, %v329
    %v449 = vsel %vm381, %v441, %v330
    %v450 = vsel %vm381, %v442, %v331
    %v451 = vsel %vm390, %v443, %v340
    %v452 = vsel %vm390, %v444, %v341
    %v453 = vsel %vm390, %v445, %v342
    %v454 = vsel %vm390, %v446, %v343
    %v455 = vsel %vm390, %v447, %v344
    %v456 = vsel %vm390, %v448, %v345
    %v457 = vsel %vm390, %v449, %v346
    %v458 = vsel %vm390, %v450, %v347
    %v459 = vsel %vm399, %v451, %v340
    %v460 = vsel %vm399, %v452, %v341
    %v461 = vsel %vm399, %v453, %v342
    %v462 = vsel %vm399, %v454, %v343
    %v463 = vsel %vm399, %v455, %v344
    %v464 = vsel %vm399, %v456, %v345
    %v465 = vsel %vm399, %v457, %v346
    %v466 = vsel %vm399, %v458, %v347
    %v467 = vsel %vm408, %v459, %v356
    %v468 = vsel %vm408, %v460, %v357
    %v469 = vsel %vm408, %v461, %v358
    %v470 = vsel %vm408, %v462, %v359
    %v471 = vsel %vm408, %v463, %v360
    %v472 = vsel %vm408, %v464, %v361
    %v473 = vsel %vm408, %v465, %v362
    %v474 = vsel %vm408, %v466, %v363
    %v475 = vsel %vm417, %v467, %v356
    %v476 = vsel %vm417, %v468, %v357
    %v477 = vsel %vm417, %v469, %v358
    %v478 = vsel %vm417, %v470, %v359
    %v479 = vsel %vm417, %v471, %v360
    %v480 = vsel %vm417, %v472, %v361
    %v481 = vsel %vm417, %v473, %v362
    %v482 = vsel %vm417, %v474, %v363
    %v483 = vsel %vm426, %v475, %v174
    %v484 = vsel %vm426, %v476, %v184
    %v485 = vsel %vm426, %v477, %v194
    %v486 = vsel %vm426, %v478, %v204
    %v487 = vsel %vm426, %v479, %v214
    %v488 = vsel %vm426, %v480, %v224
    %v489 = vsel %vm426, %v481, %v234
    %v490 = vsel %vm426, %v482, %v244
    %v499 = vrot.slane %v179, 7
    %v500 = vrot.slane %v189, 7
    %v501 = vrot.slane %v199, 7
    %v502 = vrot.slane %v209, 7
    %v503 = vrot.slane %v219, 7
    %v504 = vrot.slane %v229, 7
    %v505 = vrot.slane %v239, 7
    %v506 = vrot.slane %v249, 7
    %v515 = vrot.slane %v179, 6
    %v516 = vrot.slane %v189, 6
    %v517 = vrot.slane %v199, 6
    %v518 = vrot.slane %v209, 6
    %v519 = vrot.slane %v219, 6
    %v520 = vrot.slane %v229, 6
    %v521 = vrot.slane %v239, 6
    %v522 = vrot.slane %v249, 6
    %v531 = vrot.slane %v179, 5
    %v532 = vrot.slane %v189, 5
    %v533 = vrot.slane %v199, 5
    %v534 = vrot.slane %v209, 5
    %v535 = vrot.slane %v219, 5
    %v536 = vrot.slane %v229, 5
    %v537 = vrot.slane %v239, 5
    %v538 = vrot.slane %v249, 5
    %v547 = vrot.slane %v179, 4
    %v548 = vrot.slane %v189, 4
    %v549 = vrot.slane %v199, 4
    %v550 = vrot.slane %v209, 4
    %v551 = vrot.slane %v219, 4
    %v552 = vrot.slane %v229, 4
    %v553 = vrot.slane %v239, 4
    %v554 = vrot.slane %v249, 4
    %v563 = vrot.slane %v179, 3
    %v564 = vrot.slane %v189, 3
    %v565 = vrot.slane %v199, 3
    %v566 = vrot.slane %v209, 3
    %v567 = vrot.slane %v219, 3
    %v568 = vrot.slane %v229, 3
    %v569 = vrot.slane %v239, 3
    %v570 = vrot.slane %v249, 3
    %v579 = vrot.slane %v179, 2
    %v580 = vrot.slane %v189, 2
    %v581 = vrot.slane %v199, 2
    %v582 = vrot.slane %v209, 2
    %v583 = vrot.slane %v219, 2
    %v584 = vrot.slane %v229, 2
    %v585 = vrot.slane %v239, 2
    %v586 = vrot.slane %v249, 2
    %v595 = vrot.slane %v179, 1
    %v596 = vrot.slane %v189, 1
    %v597 = vrot.slane %v199, 1
    %v598 = vrot.slane %v209, 1
    %v599 = vrot.slane %v219, 1
    %v600 = vrot.slane %v229, 1
    %v601 = vrot.slane %v239, 1
    %v602 = vrot.slane %v249, 1
    %v611 = vsel %vm372, %v179, %v499
    %v612 = vsel %vm372, %v189, %v500
    %v613 = vsel %vm372, %v199, %v501
    %v614 = vsel %vm372, %v209, %v502
    %v615 = vsel %vm372, %v219, %v503
    %v616 = vsel %vm372, %v229, %v504
    %v617 = vsel %vm372, %v239, %v505
    %v618 = vsel %vm372, %v249, %v506
    %v619 = vsel %vm381, %v611, %v499
    %v620 = vsel %vm381, %v612, %v500
    %v621 = vsel %vm381, %v613, %v501
    %v622 = vsel %vm381, %v614, %v502
    %v623 = vsel %vm381, %v615, %v503
    %v624 = vsel %vm381, %v616, %v504
    %v625 = vsel %vm381, %v617, %v505
    %v626 = vsel %vm381, %v618, %v506
    %v627 = vsel %vm390, %v619, %v515
    %v628 = vsel %vm390, %v620, %v516
    %v629 = vsel %vm390, %v621, %v517
    %v630 = vsel %vm390, %v622, %v518
    %v631 = vsel %vm390, %v623, %v519
    %v632 = vsel %vm390, %v624, %v520
    %v633 = vsel %vm390, %v625, %v521
    %v634 = vsel %vm390, %v626, %v522
    %v635 = vsel %vm399, %v627, %v515
    %v636 = vsel %vm399, %v628, %v516
    %v637 = vsel %vm399, %v629, %v517
    %v638 = vsel %vm399, %v630, %v518
    %v639 = vsel %vm399, %v631, %v519
    %v640 = vsel %vm399, %v632, %v520
    %v641 = vsel %vm399, %v633, %v521
    %v642 = vsel %vm399, %v634, %v522
    %v643 = vsel %vm408, %v635, %v531
    %v644 = vsel %vm408, %v636, %v532
    %v645 = vsel %vm408, %v637, %v533
    %v646 = vsel %vm408, %v638, %v534
    %v647 = vsel %vm408, %v639, %v535
    %v648 = vsel %vm408, %v640, %v536
    %v649 = vsel %vm408, %v641, %v537
    %v650 = vsel %vm408, %v642, %v538
    %v651 = vsel %vm417, %v643, %v531
    %v652 = vsel %vm417, %v644, %v532
    %v653 = vsel %vm417, %v645, %v533
    %v654 = vsel %vm417, %v646, %v534
    %v655 = vsel %vm417, %v647, %v535
    %v656 = vsel %vm417, %v648, %v536
    %v657 = vsel %vm417, %v649, %v537
    %v658 = vsel %vm417, %v650, %v538
    %v659 = vsel %vm426, %v651, %v547
    %v660 = vsel %vm426, %v652, %v548
    %v661 = vsel %vm426, %v653, %v549
    %v662 = vsel %vm426, %v654, %v550
    %v663 = vsel %vm426, %v655, %v551
    %v664 = vsel %vm426, %v656, %v552
    %v665 = vsel %vm426, %v657, %v553
    %v666 = vsel %vm426, %v658, %v554
    %v667 = vsel %vm372, %v547, %v563
    %v668 = vsel %vm372, %v548, %v564
    %v669 = vsel %vm372, %v549, %v565
    %v670 = vsel %vm372, %v550, %v566
    %v671 = vsel %vm372, %v551, %v567
    %v672 = vsel %vm372, %v552, %v568
    %v673 = vsel %vm372, %v553, %v569
    %v674 = vsel %vm372, %v554, %v570
    %v675 = vsel %vm381, %v667, %v563
    %v676 = vsel %vm381, %v668, %v564
    %v677 = vsel %vm381, %v669, %v565
    %v678 = vsel %vm381, %v670, %v566
    %v679 = vsel %vm381, %v671, %v567
    %v680 = vsel %vm381, %v672, %v568
    %v681 = vsel %vm381, %v673, %v569
    %v682 = vsel %vm381, %v674, %v570
    %v683 = vsel %vm390, %v675, %v579
    %v684 = vsel %vm390, %v676, %v580
    %v685 = vsel %vm390, %v677, %v581
    %v686 = vsel %vm390, %v678, %v582
    %v687 = vsel %vm390, %v679, %v583
    %v688 = vsel %vm390, %v680, %v584
    %v689 = vsel %vm390, %v681, %v585
    %v690 = vsel %vm390, %v682, %v586
    %v691 = vsel %vm399, %v683, %v579
    %v692 = vsel %vm399, %v684, %v580
    %v693 = vsel %vm399, %v685, %v581
    %v694 = vsel %vm399, %v686, %v582
    %v695 = vsel %vm399, %v687, %v583
    %v696 = vsel %vm399, %v688, %v584
    %v697 = vsel %vm399, %v689, %v585
    %v698 = vsel %vm399, %v690, %v586
    %v699 = vsel %vm408, %v691, %v595
    %v700 = vsel %vm408, %v692, %v596
    %v701 = vsel %vm408, %v693, %v597
    %v702 = vsel %vm408, %v694, %v598
    %v703 = vsel %vm408, %v695, %v599
    %v704 = vsel %vm408, %v696, %v600
    %v705 = vsel %vm408, %v697, %v601
    %v706 = vsel %vm408, %v698, %v602
    %v707 = vsel %vm417, %v699, %v595
    %v708 = vsel %vm417, %v700, %v596
    %v709 = vsel %vm417, %v701, %v597
    %v710 = vsel %vm417, %v702, %v598
    %v711 = vsel %vm417, %v703, %v599
    %v712 = vsel %vm417, %v704, %v600
    %v713 = vsel %vm417, %v705, %v601
    %v714 = vsel %vm417, %v706, %v602
    %v715 = vsel %vm426, %v707, %v179
    %v716 = vsel %vm426, %v708, %v189
    %v717 = vsel %vm426, %v709, %v199
    %v718 = vsel %vm426, %v710, %v209
    %v719 = vsel %vm426, %v711, %v219
    %v720 = vsel %vm426, %v712, %v229
    %v721 = vsel %vm426, %v713, %v239
    %v722 = vsel %vm426, %v714, %v249
    %vm723 = vcmask 261120
    %724 = vst.msk [vmem:[#allocation7] sm:$0xff] %vm723, %v427
    %725 = vst.msk [vmem:[#allocation7 + $0x8] sm:$0xff] %vm723, %v483
    %726 = vst.msk [vmem:[#allocation7 + $0x10] sm:$0xff] %vm723, %v659
    %727 = vst.msk [vmem:[#allocation7 + $0x18] sm:$0xff] %vm723, %v715
    %728 = vst.msk [vmem:[#allocation7 + $0x20] sm:$0xff] %vm723, %v428
    %729 = vst.msk [vmem:[#allocation7 + $0x28] sm:$0xff] %vm723, %v484
    %730 = vst.msk [vmem:[#allocation7 + $0x30] sm:$0xff] %vm723, %v660
    %731 = vst.msk [vmem:[#allocation7 + $0x38] sm:$0xff] %vm723, %v716
    %732 = vst.msk [vmem:[#allocation7 + $0x40] sm:$0xff] %vm723, %v429
    %733 = vst.msk [vmem:[#allocation7 + $0x48] sm:$0xff] %vm723, %v485
    %734 = vst.msk [vmem:[#allocation7 + $0x50] sm:$0xff] %vm723, %v661
    %735 = vst.msk [vmem:[#allocation7 + $0x58] sm:$0xff] %vm723, %v717
    %736 = vst.msk [vmem:[#allocation7 + $0x60] sm:$0xff] %vm723, %v430
    %737 = vst.msk [vmem:[#allocation7 + $0x68] sm:$0xff] %vm723, %v486
    %738 = vst.msk [vmem:[#allocation7 + $0x70] sm:$0xff] %vm723, %v662
    %739 = vst.msk [vmem:[#allocation7 + $0x78] sm:$0xff] %vm723, %v718
    %740 = vst.msk [vmem:[#allocation7 + $0x80] sm:$0xff] %vm723, %v431
    %741 = vst.msk [vmem:[#allocation7 + $0x88] sm:$0xff] %vm723, %v487
    %742 = vst.msk [vmem:[#allocation7 + $0x90] sm:$0xff] %vm723, %v663
    %743 = vst.msk [vmem:[#allocation7 + $0x98] sm:$0xff] %vm723, %v719
    %744 = vst.msk [vmem:[#allocation7 + $0xa0] sm:$0xff] %vm723, %v432
    %745 = vst.msk [vmem:[#allocation7 + $0xa8] sm:$0xff] %vm723, %v488
    %746 = vst.msk [vmem:[#allocation7 + $0xb0] sm:$0xff] %vm723, %v664
    %747 = vst.msk [vmem:[#allocation7 + $0xb8] sm:$0xff] %vm723, %v720
    %748 = vst.msk [vmem:[#allocation7 + $0xc0] sm:$0xff] %vm723, %v433
    %749 = vst.msk [vmem:[#allocation7 + $0xc8] sm:$0xff] %vm723, %v489
    %750 = vst.msk [vmem:[#allocation7 + $0xd0] sm:$0xff] %vm723, %v665
    %751 = vst.msk [vmem:[#allocation7 + $0xd8] sm:$0xff] %vm723, %v721
    %752 = vst.msk [vmem:[#allocation7 + $0xe0] sm:$0xff] %vm723, %v434
    %753 = vst.msk [vmem:[#allocation7 + $0xe8] sm:$0xff] %vm723, %v490
    %754 = vst.msk [vmem:[#allocation7 + $0xf0] sm:$0xff] %vm723, %v666
    %755 = vst.msk [vmem:[#allocation7 + $0xf8] sm:$0xff] %vm723, %v722
    // Predicated region
    $region18: #{interpolate.1} parent=1 // pred_check
      _
    $region19: #{interpolate.1} parent=1 // pred_check_branch
      %757 = sbr.rel (0) target = $region21
    $region20: #{interpolate.1} parent=1 // pred_region
      %s759 = ssub.s32 4096, 4096
      %760 = vsyncadd [#allocation4], %s759
      %s761 = sshll.u32 [#allocation7], 4
      %s762 = int_to_ptr.vmem [resolvable:$true] %s761
      %767 = dma.vmem_to_hbm [thread:$0]  %s762, 4096, %s2, [#allocation4], 128, 128, 8
    $region21: #{interpolate.1} parent=1 // pred_fallthru
      _
    // Predicated region
    $region22: #{interpolate.1} parent=1 // pred_check
      _
    $region23: #{interpolate.1} parent=1 // pred_check_branch
      %769 = sbr.rel (0) target = $region25
    $region24: #{interpolate.1} parent=1 // pred_region
      %770 = dma.done [#allocation4], 4096
    $region25: #{interpolate.1} parent=1 // pred_fallthru
      _
    %771 = vsyncpa [#allocation3], 1
    %772 = vsyncpa [#allocation6], 1
    %773 = vsyncpa [#allocation4], 1

</llo_original>
